<compile_context>
chip_gen: v7x
topology: tpu7x:2x2x1
jax: 0.10.0
libtpu: 0.0.40
codegen_flags: <defaults>
</compile_context>

<pallas_src>
import functools

import jax
import jax.numpy as jnp
from jax.experimental import pallas as pl
from jax.experimental.pallas import tpu as pltpu

# Small stand-ins for the real nr_pn=360 / nr_kc=20000.  Deliberately NOT
# multiples of 128 (and batch not a multiple of 8) so the padding path runs.
NR_PN = 72
NR_KC = 520
BATCH = 6


def _round_up(x, m):
    return (x + m - 1) // m * m


def _pick_tile(dim, max_tile):
    """Largest multiple-of-128 tile <= max_tile with small padding waste."""
    d128 = _round_up(dim, 128)
    if d128 <= max_tile:
        return d128
    tile = max_tile - max_tile % 128
    while tile > 128:
        if _round_up(dim, tile) - d128 <= d128 // 16:   # <= ~6% extra bytes
            return tile
        tile -= 128
    return 128


def _linsig_kernel(x_ref, w_ref, b_ref, o_ref):
    """One (i, j) grid step of sigmoid(x @ W + b) with the full K in-block."""
    acc = jnp.dot(x_ref[...], w_ref[...], preferred_element_type=jnp.float32)
    o_ref[...] = jax.nn.sigmoid(acc + b_ref[...]).astype(o_ref.dtype)


def _linsig_ktiled_kernel(x_ref, w_ref, b_ref, o_ref, acc_ref):
    """One (i, j, k) grid step; K reduction carried in an f32 VMEM scratch."""
    k = pl.program_id(2)

    @pl.when(k == 0)
    def _():
        acc_ref[...] = jnp.zeros_like(acc_ref)

    acc_ref[...] += jnp.dot(x_ref[...], w_ref[...],
                            preferred_element_type=jnp.float32)

    @pl.when(k == pl.num_programs(2) - 1)
    def _():
        o_ref[...] = jax.nn.sigmoid(acc_ref[...] + b_ref[...]).astype(o_ref.dtype)


@functools.partial(jax.jit, static_argnames=("max_tn", "max_tk", "compute_dtype"))
def linear_sigmoid(x, w, b, *, max_tn=512, max_tk=2048,
                   compute_dtype=jnp.bfloat16):
    """y = sigmoid(x @ w + b);  x:[M,K], w:[K,N], b:[1,N] -> y:[M,N] (f32)."""
    M, K = x.shape
    K2, N = w.shape
    assert K == K2 and b.shape == (1, N)

    # --- static tile / padding selection -----------------------------------
    tm = _round_up(min(max(M, 1), 128), 8)
    Mp = _round_up(M, tm)
    m_blocks = Mp // tm

    tn = _pick_tile(N, max_tn)
    Np = _round_up(N, tn)
    # Keep >= 2 parallel grid blocks so both v7x TensorCores get work.
    if m_blocks == 1 and Np // tn == 1 and Np >= 256:
        tn = 128
        Np = _round_up(N, tn)
    n_blocks = Np // tn

    kp128 = _round_up(K, 128)
    tk = kp128 if kp128 <= max_tk else _pick_tile(K, max_tk)
    Kp = _round_up(K, tk)
    k_blocks = Kp // tk

    # --- pad + cast at the boundary (zeros don't perturb the matmul) -------
    xp = jnp.pad(x, ((0, Mp - M), (0, Kp - K))).astype(compute_dtype)
    wp = jnp.pad(w, ((0, Kp - K), (0, Np - N))).astype(compute_dtype)
    bp = jnp.pad(b, ((0, 0), (0, Np - N))).astype(jnp.float32)

    elt = jnp.dtype(compute_dtype).itemsize
    vmem_need = (2 * (tm * tk * elt + tk * tn * elt + tn * 4 + tm * tn * 4)
                 + tm * tn * 4 + (1 << 20))
    vmem_limit = int(min(max(vmem_need, 16 << 20), 48 << 20))

    cost = pl.CostEstimate(
        flops=2 * Mp * Kp * Np,
        transcendentals=Mp * Np,
        bytes_accessed=xp.size * elt + wp.size * elt + bp.size * 4 + Mp * Np * 4,
    )

    if k_blocks == 1:
        out_p = pl.pallas_call(
            _linsig_kernel,
            out_shape=jax.ShapeDtypeStruct((Mp, Np), jnp.float32),
            grid_spec=pltpu.PrefetchScalarGridSpec(
                num_scalar_prefetch=0,
                grid=(m_blocks, n_blocks),
                in_specs=[
                    pl.BlockSpec((tm, Kp), lambda i, j: (i, 0)),   # x (full K)
                    pl.BlockSpec((Kp, tn), lambda i, j: (0, j)),   # W slab
                    pl.BlockSpec((1, tn), lambda i, j: (0, j)),    # bias
                ],
                out_specs=pl.BlockSpec((tm, tn), lambda i, j: (i, j)),
            ),
            compiler_params=pltpu.CompilerParams(
                dimension_semantics=("parallel", "parallel"),
                vmem_limit_bytes=vmem_limit,
            ),
            cost_estimate=cost,
        )(xp, wp, bp)
    else:
        out_p = pl.pallas_call(
            _linsig_ktiled_kernel,
            out_shape=jax.ShapeDtypeStruct((Mp, Np), jnp.float32),
            grid_spec=pltpu.PrefetchScalarGridSpec(
                num_scalar_prefetch=0,
                grid=(m_blocks, n_blocks, k_blocks),
                in_specs=[
                    pl.BlockSpec((tm, tk), lambda i, j, k: (i, k)),   # x tile
                    pl.BlockSpec((tk, tn), lambda i, j, k: (k, j)),   # W tile
                    pl.BlockSpec((1, tn), lambda i, j, k: (0, j)),    # bias
                ],
                out_specs=pl.BlockSpec((tm, tn), lambda i, j, k: (i, j)),
                scratch_shapes=[pltpu.VMEM((tm, tn), jnp.float32)],
            ),
            compiler_params=pltpu.CompilerParams(
                dimension_semantics=("parallel", "parallel", "arbitrary"),
                vmem_limit_bytes=vmem_limit,
            ),
            cost_estimate=cost,
        )(xp, wp, bp)

    return out_p[:M, :N]


def sparse_autoencoder_forward(pn, params):
    """Mirrors SparseAutoencoder.forward: (kc_activation, restored_input)."""
    kc_activation = linear_sigmoid(pn, params["w_pn2kc"], params["b_pn2kc"])
    restored_input = linear_sigmoid(kc_activation, params["w_kc2pn"],
                                    params["b_kc2pn"])
    return kc_activation, restored_input


def init_params(key, nr_pn, nr_kc):
    """Same shapes as nn.Linear, stored [in, out]; weights kept in bf16
    (HBM-bandwidth-bound weight stream), biases in f32."""
    k1, k2, k3, k4 = jax.random.split(key, 4)
    s1 = nr_pn ** -0.5
    s2 = nr_kc ** -0.5
    return {
        "w_pn2kc": jax.random.uniform(k1, (nr_pn, nr_kc), jnp.float32,
                                      -s1, s1).astype(jnp.bfloat16),
        "b_pn2kc": jax.random.uniform(k2, (1, nr_kc), jnp.float32, -s1, s1),
        "w_kc2pn": jax.random.uniform(k3, (nr_kc, nr_pn), jnp.float32,
                                      -s2, s2).astype(jnp.bfloat16),
        "b_kc2pn": jax.random.uniform(k4, (1, nr_pn), jnp.float32, -s2, s2),
    }


if __name__ == "__main__":
    root = jax.random.PRNGKey(0)
    k_params, k_input = jax.random.split(root)

    params = init_params(k_params, NR_PN, NR_KC)
    pn = jax.random.normal(k_input, (BATCH, NR_PN), jnp.float32)

    kc_activation, restored_input = sparse_autoencoder_forward(pn, params)
    jax.block_until_ready((kc_activation, restored_input))

    assert kc_activation.shape == (BATCH, NR_KC)
    assert restored_input.shape == (BATCH, NR_PN)

    # Pure-JAX reference with identical bf16 quantization, f32 math.
    def ref_layer(x, w, b):
        xf = x.astype(jnp.bfloat16).astype(jnp.float32)
        wf = w.astype(jnp.bfloat16).astype(jnp.float32)
        return jax.nn.sigmoid(xf @ wf + b.astype(jnp.float32))

    kc_ref = ref_layer(pn, params["w_pn2kc"], params["b_pn2kc"])
    out_ref = ref_layer(kc_ref, params["w_kc2pn"], params["b_kc2pn"])
    assert jnp.allclose(kc_activation, kc_ref, atol=2e-3, rtol=2e-3)
    assert jnp.allclose(restored_input, out_ref, atol=5e-3, rtol=5e-3)

    # Exercise the K-tiled reduction path (used for the real kc2pn layer,
    # K = nr_kc = 20000) by forcing a small max_tk at the demo size.
    tiled = linear_sigmoid(kc_activation, params["w_kc2pn"],
                           params["b_kc2pn"], max_tk=128)
    jax.block_until_ready(tiled)
    assert jnp.allclose(tiled, out_ref, atol=5e-3, rtol=5e-3)

    print("KERNEL_OK")
</pallas_src>

<mosaic_0001>
module attributes {stable_mosaic.version = 11 : i64} {
  func.func @_linsig_kernel(%arg0: i32, %arg1: i32, %arg2: memref<8x128xbf16, #tpu.memory_space<vmem>>, %arg3: memref<128x128xbf16, #tpu.memory_space<vmem>>, %arg4: memref<1x128xf32, #tpu.memory_space<vmem>>, %arg5: memref<8x128xf32, #tpu.memory_space<vmem>>) attributes {dimension_semantics = [#tpu.dimension_semantics<parallel>, #tpu.dimension_semantics<parallel>], iteration_bounds = array<i64: 1, 5>, scalar_prefetch = 0 : i64, scratch_operands = 0 : i64, tpu.core_type = #tpu.core_type<tc>, window_params = [{transform_indices = @transform_0, window_bounds = array<i64: 8, 128>}, {transform_indices = @transform_1, window_bounds = array<i64: 128, 128>}, {transform_indices = @transform_2, window_bounds = array<i64: 1, 128>}, {transform_indices = @transform_3, window_bounds = array<i64: 8, 128>}]} {
    %c0 = arith.constant 0 : index
    %c0_0 = arith.constant 0 : index
    %0 = vector.load %arg2[%c0, %c0_0] : memref<8x128xbf16, #tpu.memory_space<vmem>>, vector<8x128xbf16>
    %c0_1 = arith.constant 0 : index
    %c0_2 = arith.constant 0 : index
    %1 = vector.load %arg3[%c0_1, %c0_2] : memref<128x128xbf16, #tpu.memory_space<vmem>>, vector<128x128xbf16>
    %cst = arith.constant dense<0.000000e+00> : vector<8x128xf32>
    %2 = tpu.matmul %0, %1, %cst {dimension_numbers = #tpu.dot_dimension_numbers<[1], [0], [0], [1], [0, 0, 1, 1], [], []>} : vector<8x128xbf16>, vector<128x128xbf16>, vector<8x128xf32> -> vector<8x128xf32>
    %c0_3 = arith.constant 0 : index
    %c0_4 = arith.constant 0 : index
    %3 = vector.load %arg4[%c0_3, %c0_4] : memref<1x128xf32, #tpu.memory_space<vmem>>, vector<1x128xf32>
    %4 = vector.broadcast %3 : vector<1x128xf32> to vector<8x128xf32>
    %5 = arith.addf %2, %4 : vector<8x128xf32>
    %6 = arith.negf %5 : vector<8x128xf32>
    %7 = math.exp %6 : vector<8x128xf32>
    %cst_5 = arith.constant 1.000000e+00 : f32
    %8 = vector.broadcast %cst_5 : f32 to vector<8x128xf32>
    %9 = arith.addf %8, %7 : vector<8x128xf32>
    %10 = arith.divf %8, %9 : vector<8x128xf32>
    %c0_6 = arith.constant 0 : index
    %c0_7 = arith.constant 0 : index
    %11 = vector.load %arg5[%c0_6, %c0_7] : memref<8x128xf32, #tpu.memory_space<vmem>>, vector<8x128xf32>
    tpu.vector_store %arg5[%c0_6, %c0_7], %10 {strides = array<i32>} : memref<8x128xf32, #tpu.memory_space<vmem>>, vector<8x128xf32>,
    return
  }
  func.func @transform_0(%arg0: i32, %arg1: i32) -> (i32, i32) {
    %c0_i32 = arith.constant 0 : i32
    %c0_i32_0 = arith.constant 0 : i32
    return %arg0, %c0_i32 : i32, i32
  }
  func.func @transform_1(%arg0: i32, %arg1: i32) -> (i32, i32) {
    %c0_i32 = arith.constant 0 : i32
    %c0_i32_0 = arith.constant 0 : i32
    return %c0_i32, %arg1 : i32, i32
  }
  func.func @transform_2(%arg0: i32, %arg1: i32) -> (i32, i32) {
    %c0_i32 = arith.constant 0 : i32
    %c0_i32_0 = arith.constant 0 : i32
    return %c0_i32, %arg1 : i32, i32
  }
  func.func @transform_3(%arg0: i32, %arg1: i32) -> (i32, i32) {
    %c0_i32 = arith.constant 0 : i32
    return %arg0, %arg1 : i32, i32
  }
}

</mosaic_0001>

<llo_original>
// kernel: linear_sigmoid.1
$region0: #{linear_sigmoid.1}
  #allocation0 [shape = 'u32[]', space=smem, size = 0x4, offset = 0x4, fixed_abs, tag = 'smem constant byte address 0x4 - core index']
  #allocation1 [shape = 'u32[144,128]{1,0:T(1,128)}', space=vmem, size = 0x12000, scoped, tag = 'internal scratch']
  %s0 = inlined_call_operand.vmem [shape: bf16[8,128], index: 0, kind: input, shape index: {}]
  %s1 = inlined_call_operand.vmem [shape: bf16[128,640], index: 1, kind: input, shape index: {}]
  %s2 = inlined_call_operand.vmem [shape: f32[1,640], index: 2, kind: input, shape index: {}]
  %s3 = inlined_call_operand.hbm [shape: f32[8,640], index: 3, kind: output, shape index: {}]
  %s4 = sld [smem:[#allocation0]]
  $region86: #{linear_sigmoid.1} parent=0
    _
  %s6 = ssub.s32 1, %s4
  %s7 = scalar_select 0, %s6, %s4
  $region1: #{linear_sigmoid.1} parent=0
    #allocation2 [shape = 'u8[65536]{0}', space=vmem, size = 0x10000, scoped, tag = 'input window, operand 1']
    #allocation3 [shape = 'u8[8192]{0}', space=vmem, size = 0x2000, scoped, tag = 'output window, operand 0']
    #allocation4 [shape = 's32[2]{0}', space=sflag, size = 0x8, scoped, tag = 'scoped memory for linear_sigmoid.1']
    %8 = vsyncpa [#allocation4], 0
    %s9 = scalar_lea.sflag [#allocation4], 1
    %10 = vsyncpa %s9, 0
    loop: start=0, step=1, limit=7
    $region2: #{linear_sigmoid.1} parent=1 // loop_pre_header
      _
    $region3: #{linear_sigmoid.1} parent=1 // loop_header
      %s12 = sphi 0, %s16
      %p13 = scmp.ge.s32.totalorder %s12, 7
      %s19 = sphi 0, %s31
      %s20 = sphi 0, %s27
      %s21 = sphi 0, %s19
      %s22 = sphi 0, %s20
      %s23 = sphi 0, %s21
      %s24 = sphi 0, %s22
      %s34 = sphi 0, %s36
      %s37 = sphi 0, %s34
      %s38 = sphi 0, %s37
      %s54 = sphi 0, %s38
      %s60 = sphi 0, %s62
      %s63 = sphi 0, %s60
      %s64 = sphi 0, %s63
      %s80 = sphi 0, %s64
      %s86 = sphi 0, %s88
      %s89 = sphi 0, %s86
      %s90 = sphi 0, %s89
      %s106 = sphi 0, %s90
      %s114 = sphi 0, %s116
      %s117 = sphi 0, %s114
      %s118 = sphi 0, %s117
      %s134 = sphi 0, %s118
    $region4: #{linear_sigmoid.1} parent=1 // loop_header_branch
      %15 = sbr.rel (%p13) target = $region8
    $region5: #{linear_sigmoid.1} parent=1 // loop_body
      %s17 = ssub.s32 %s12, 1
      %s18 = ssub.s32 %s12, 2
      %s25 = sadd.s32 1, %s20
      %p26 = scmp.ge.s32.totalorder %s25, 5
      %s27 = scalar_select %p26, 0, %s25
      %s28 = sadd.s32 1, %s19
      %s29 = scalar_select %p26, %s28, %s19
      %p30 = scmp.ge.s32.totalorder %s29, 1
      %s31 = scalar_select %p30, 0, %s29
      %s32 = ssub.s32 %s19, %s31
      %p33 = scmp.eq.s32.totalorder %s32, 0
      %s35 = sadd.s32 %s34, 1
      %s36 = scalar_select %p33, %s34, %s35
      %p39 = pneg %p33
      %p40 = scmp.eq.s32.totalorder %s12, 4
      %p41 = por %p39, %p40
      %p42 = scmp.ne.s32.totalorder %s34, %s37
      %p43 = scmp.eq.s32.totalorder %s12, 0
      %p44 = por %p42, %p43
      %p45 = scmp.ne.s32.totalorder %s34, %s37
      %p46 = scmp.eq.s32.totalorder %s17, 4
      %p47 = por %p45, %p46
      %p48 = scmp.ne.s32.totalorder %s37, %s38
      %p49 = scmp.eq.s32.totalorder %s17, 0
      %p50 = por %p48, %p49
      %p51 = scmp.ne.s32.totalorder %s37, %s38
      %p52 = scmp.eq.s32.totalorder %s18, 4
      %p53 = por %p51, %p52
      %p55 = scmp.ne.s32.totalorder %s38, %s54
      %p56 = scmp.eq.s32.totalorder %s18, 0
      %p57 = por %p55, %p56
      %s58 = ssub.s32 %s20, %s27
      %p59 = scmp.eq.s32.totalorder %s58, 0
      %s61 = sadd.s32 %s60, 1
      %s62 = scalar_select %p59, %s60, %s61
      %p65 = pneg %p59
      %p66 = scmp.eq.s32.totalorder %s12, 4
      %p67 = por %p65, %p66
      %p68 = scmp.ne.s32.totalorder %s60, %s63
      %p69 = scmp.eq.s32.totalorder %s12, 0
      %p70 = por %p68, %p69
      %p71 = scmp.ne.s32.totalorder %s60, %s63
      %p72 = scmp.eq.s32.totalorder %s17, 4
      %p73 = por %p71, %p72
      %p74 = scmp.ne.s32.totalorder %s63, %s64
      %p75 = scmp.eq.s32.totalorder %s17, 0
      %p76 = por %p74, %p75
      %p77 = scmp.ne.s32.totalorder %s63, %s64
      %p78 = scmp.eq.s32.totalorder %s18, 4
      %p79 = por %p77, %p78
      %p81 = scmp.ne.s32.totalorder %s64, %s80
      %p82 = scmp.eq.s32.totalorder %s18, 0
      %p83 = por %p81, %p82
      %s84 = ssub.s32 %s20, %s27
      %p85 = scmp.eq.s32.totalorder %s84, 0
      %s87 = sadd.s32 %s86, 1
      %s88 = scalar_select %p85, %s86, %s87
      %p91 = pneg %p85
      %p92 = scmp.eq.s32.totalorder %s12, 4
      %p93 = por %p91, %p92
      %p94 = scmp.ne.s32.totalorder %s86, %s89
      %p95 = scmp.eq.s32.totalorder %s12, 0
      %p96 = por %p94, %p95
      %p97 = scmp.ne.s32.totalorder %s86, %s89
      %p98 = scmp.eq.s32.totalorder %s17, 4
      %p99 = por %p97, %p98
      %p100 = scmp.ne.s32.totalorder %s89, %s90
      %p101 = scmp.eq.s32.totalorder %s17, 0
      %p102 = por %p100, %p101
      %p103 = scmp.ne.s32.totalorder %s89, %s90
      %p104 = scmp.eq.s32.totalorder %s18, 4
      %p105 = por %p103, %p104
      %p107 = scmp.ne.s32.totalorder %s90, %s106
      %p108 = scmp.eq.s32.totalorder %s18, 0
      %p109 = por %p107, %p108
      %s110 = ssub.s32 %s19, %s31
      %s111 = ssub.s32 %s20, %s27
      %s112 = sor.u32 %s110, %s111
      %p113 = scmp.eq.s32.totalorder %s112, 0
      %s115 = sadd.s32 %s114, 1
      %s116 = scalar_select %p113, %s114, %s115
      %p119 = pneg %p113
      %p120 = scmp.eq.s32.totalorder %s12, 4
      %p121 = por %p119, %p120
      %p122 = scmp.ne.s32.totalorder %s114, %s117
      %p123 = scmp.eq.s32.totalorder %s12, 0
      %p124 = por %p122, %p123
      %p125 = scmp.ne.s32.totalorder %s114, %s117
      %p126 = scmp.eq.s32.totalorder %s17, 4
      %p127 = por %p125, %p126
      %p128 = scmp.ne.s32.totalorder %s117, %s118
      %p129 = scmp.eq.s32.totalorder %s17, 0
      %p130 = por %p128, %p129
      %p131 = scmp.ne.s32.totalorder %s117, %s118
      %p132 = scmp.eq.s32.totalorder %s18, 4
      %p133 = por %p131, %p132
      %p135 = scmp.ne.s32.totalorder %s118, %s134
      %p136 = scmp.eq.s32.totalorder %s18, 0
      %p137 = por %p135, %p136
      %p138 = scmp.le.s32.totalorder 1, %s12
      %p139 = scmp.lt.s32.totalorder %s12, 6
      %p140 = pnand %p138, %p139
      %p141 = pneg %p140
      // Predicated region
      $region9: #{linear_sigmoid.1} parent=5 // pred_check
        _
      $region10: #{linear_sigmoid.1} parent=5 // pred_check_branch
        %143 = sbr.rel (%p140) target = $region12
      $region11: #{linear_sigmoid.1} parent=5 // pred_region
        %s144 = ssub.s32 %s12, 1
        // Predicated region
        $region13: #{linear_sigmoid.1} parent=11 // pred_check
          %p145 = pneg %p50
        $region14: #{linear_sigmoid.1} parent=11 // pred_check_branch
          %147 = sbr.rel (%p145) target = $region16
        $region15: #{linear_sigmoid.1} parent=11 // pred_region
          %p148 = scmp.lt.s32.totalorder %s21, 0
          %s149 = scalar_select %p148, %s21, 0
          %s150 = smul.addr %s149, 4
          %s151 = scalar_lea.vmem %s0, %s150
        $region16: #{linear_sigmoid.1} parent=11 // pred_fallthru
          _
      $region12: #{linear_sigmoid.1} parent=5 // pred_fallthru
        _
      %p152 = scmp.lt.s32.totalorder %s12, 5
      // Predicated region
      $region17: #{linear_sigmoid.1} parent=5 // pred_check
        %p153 = pneg %p152
      $region18: #{linear_sigmoid.1} parent=5 // pred_check_branch
        %155 = sbr.rel (%p153) target = $region20
      $region19: #{linear_sigmoid.1} parent=5 // pred_region
        // Predicated region
        $region21: #{linear_sigmoid.1} parent=19 // pred_check
          %p156 = pneg %p70
        $region22: #{linear_sigmoid.1} parent=19 // pred_check_branch
          %158 = sbr.rel (%p156) target = $region24
        $region23: #{linear_sigmoid.1} parent=19 // pred_region
          %s159 = sand.u32 %s60, 1
          %s160 = sand.u32 %s60, 1
          %s161 = smul.addr %s160, 64
          %s162 = scalar_lea.vmem [#allocation2], %s161
          %s163 = smul.addr %s20, 4
          %s164 = scalar_lea.vmem %s1, %s163
          // Predicated region
          $region25: #{linear_sigmoid.1} parent=23 // pred_check
            _
          $region26: #{linear_sigmoid.1} parent=23 // pred_check_branch
            %166 = sbr.rel (0) target = $region28
          $region27: #{linear_sigmoid.1} parent=23 // pred_region
            // Predicated region
            $region29: #{linear_sigmoid.1} parent=27 // pred_check
              _
            $region30: #{linear_sigmoid.1} parent=27 // pred_check_branch
              %168 = sbr.rel target = $region32
            $region31: #{linear_sigmoid.1} parent=27 // pred_region
              // Predicated region
              $region44: #{linear_sigmoid.1} parent=31 // pred_check
                _
              $region45: #{linear_sigmoid.1} parent=31 // pred_check_branch
                %213 = sbr.rel (0) target = $region47
              $region46: #{linear_sigmoid.1} parent=31 // pred_region
                loop: start=0, step=1, limit=1
                $region48: #{linear_sigmoid.1} parent=46 // loop_pre_header
                  _
                $region49: #{linear_sigmoid.1} parent=46 // loop_header
                  %s215 = sphi 0, %s219
                  %p216 = scmp.ge.s32.totalorder %s215, 1
                  %s220 = sphi %s164, %s164
                  %s221 = sphi %s162, %s162
                $region50: #{linear_sigmoid.1} parent=46 // loop_header_branch
                  %218 = sbr.rel (%p216) target = $region54
                $region51: #{linear_sigmoid.1} parent=46 // loop_body
                  _
                $region52: #{linear_sigmoid.1} parent=46 // loop_footer
                  %s219 = sadd.s32 1, %s215
                $region53: #{linear_sigmoid.1} parent=46 // loop_footer_branch
                  %214 = sbr.rel target = $region49
                $region54: #{linear_sigmoid.1} parent=46 // loop_exit
                  _
                loop: start=0, step=1, limit=1
                $region55: #{linear_sigmoid.1} parent=46 // loop_pre_header
                  _
                $region56: #{linear_sigmoid.1} parent=46 // loop_header
                  %s224 = sphi 0, %s228
                  %p225 = scmp.ge.s32.totalorder %s224, 1
                  %s229 = sphi %s164, %s164
                  %s230 = sphi %s162, %s162
                $region57: #{linear_sigmoid.1} parent=46 // loop_header_branch
                  %227 = sbr.rel (%p225) target = $region61
                $region58: #{linear_sigmoid.1} parent=46 // loop_body
                  %v231 = vld [vmem:[%s229] sm:$0xf]
                  %232 = vst [vmem:[%s230] sm:$0xf] %v231
                  %v233 = vld [vmem:[%s229 + $0x14] sm:$0xf]
                  %234 = vst [vmem:[%s230 + $0x4] sm:$0xf] %v233
                  %v235 = vld [vmem:[%s229 + $0x28] sm:$0xf]
                  %236 = vst [vmem:[%s230 + $0x8] sm:$0xf] %v235
                  %v237 = vld [vmem:[%s229 + $0x3c] sm:$0xf]
                  %238 = vst [vmem:[%s230 + $0xc] sm:$0xf] %v237
                  %v239 = vld [vmem:[%s229 + $0x50] sm:$0xf]
                  %240 = vst [vmem:[%s230 + $0x10] sm:$0xf] %v239
                  %v241 = vld [vmem:[%s229 + $0x64] sm:$0xf]
                  %242 = vst [vmem:[%s230 + $0x14] sm:$0xf] %v241
                  %v243 = vld [vmem:[%s229 + $0x78] sm:$0xf]
                  %244 = vst [vmem:[%s230 + $0x18] sm:$0xf] %v243
                  %v245 = vld [vmem:[%s229 + $0x8c] sm:$0xf]
                  %246 = vst [vmem:[%s230 + $0x1c] sm:$0xf] %v245
                  %v247 = vld [vmem:[%s229 + $0xa0] sm:$0xf]
                  %248 = vst [vmem:[%s230 + $0x20] sm:$0xf] %v247
                  %v249 = vld [vmem:[%s229 + $0xb4] sm:$0xf]
                  %250 = vst [vmem:[%s230 + $0x24] sm:$0xf] %v249
                  %v251 = vld [vmem:[%s229 + $0xc8] sm:$0xf]
                  %252 = vst [vmem:[%s230 + $0x28] sm:$0xf] %v251
                  %v253 = vld [vmem:[%s229 + $0xdc] sm:$0xf]
                  %254 = vst [vmem:[%s230 + $0x2c] sm:$0xf] %v253
                  %v255 = vld [vmem:[%s229 + $0xf0] sm:$0xf]
                  %256 = vst [vmem:[%s230 + $0x30] sm:$0xf] %v255
                  %v257 = vld [vmem:[%s229 + $0x104] sm:$0xf]
                  %258 = vst [vmem:[%s230 + $0x34] sm:$0xf] %v257
                  %v259 = vld [vmem:[%s229 + $0x118] sm:$0xf]
                  %260 = vst [vmem:[%s230 + $0x38] sm:$0xf] %v259
                  %v261 = vld [vmem:[%s229 + $0x12c] sm:$0xf]
                  %262 = vst [vmem:[%s230 + $0x3c] sm:$0xf] %v261
                $region59: #{linear_sigmoid.1} parent=46 // loop_footer
                  %s228 = sadd.s32 1, %s224
                $region60: #{linear_sigmoid.1} parent=46 // loop_footer_branch
                  %223 = sbr.rel target = $region56
                $region61: #{linear_sigmoid.1} parent=46 // loop_exit
                  _
              $region47: #{linear_sigmoid.1} parent=31 // pred_fallthru
                _
            $region32: #{linear_sigmoid.1} parent=27 // pred_fallthru
              _
            // Predicated region
            $region33: #{linear_sigmoid.1} parent=27 // pred_check
              _
            $region34: #{linear_sigmoid.1} parent=27 // pred_check_branch
              %170 = sbr.rel (0) target = $region36
            $region35: #{linear_sigmoid.1} parent=27 // pred_region
              loop: start=0, step=1, limit=1
              $region37: #{linear_sigmoid.1} parent=35 // loop_pre_header
                _
              $region38: #{linear_sigmoid.1} parent=35 // loop_header
                %s173 = sphi 0, %s177
                %p174 = scmp.ge.s32.totalorder %s173, 1
                %s178 = sphi %s164, %s164
                %s179 = sphi %s162, %s162
              $region39: #{linear_sigmoid.1} parent=35 // loop_header_branch
                %176 = sbr.rel (%p174) target = $region43
              $region40: #{linear_sigmoid.1} parent=35 // loop_body
                %v180 = vld [vmem:[%s178] sm:$0xf]
                %181 = vst [vmem:[%s179] sm:$0xf] %v180
                %v182 = vld [vmem:[%s178 + $0x14] sm:$0xf]
                %183 = vst [vmem:[%s179 + $0x4] sm:$0xf] %v182
                %v184 = vld [vmem:[%s178 + $0x28] sm:$0xf]
                %185 = vst [vmem:[%s179 + $0x8] sm:$0xf] %v184
                %v186 = vld [vmem:[%s178 + $0x3c] sm:$0xf]
                %187 = vst [vmem:[%s179 + $0xc] sm:$0xf] %v186
                %v188 = vld [vmem:[%s178 + $0x50] sm:$0xf]
                %189 = vst [vmem:[%s179 + $0x10] sm:$0xf] %v188
                %v190 = vld [vmem:[%s178 + $0x64] sm:$0xf]
                %191 = vst [vmem:[%s179 + $0x14] sm:$0xf] %v190
                %v192 = vld [vmem:[%s178 + $0x78] sm:$0xf]
                %193 = vst [vmem:[%s179 + $0x18] sm:$0xf] %v192
                %v194 = vld [vmem:[%s178 + $0x8c] sm:$0xf]
                %195 = vst [vmem:[%s179 + $0x1c] sm:$0xf] %v194
                %v196 = vld [vmem:[%s178 + $0xa0] sm:$0xf]
                %197 = vst [vmem:[%s179 + $0x20] sm:$0xf] %v196
                %v198 = vld [vmem:[%s178 + $0xb4] sm:$0xf]
                %199 = vst [vmem:[%s179 + $0x24] sm:$0xf] %v198
                %v200 = vld [vmem:[%s178 + $0xc8] sm:$0xf]
                %201 = vst [vmem:[%s179 + $0x28] sm:$0xf] %v200
                %v202 = vld [vmem:[%s178 + $0xdc] sm:$0xf]
                %203 = vst [vmem:[%s179 + $0x2c] sm:$0xf] %v202
                %v204 = vld [vmem:[%s178 + $0xf0] sm:$0xf]
                %205 = vst [vmem:[%s179 + $0x30] sm:$0xf] %v204
                %v206 = vld [vmem:[%s178 + $0x104] sm:$0xf]
                %207 = vst [vmem:[%s179 + $0x34] sm:$0xf] %v206
                %v208 = vld [vmem:[%s178 + $0x118] sm:$0xf]
                %209 = vst [vmem:[%s179 + $0x38] sm:$0xf] %v208
                %v210 = vld [vmem:[%s178 + $0x12c] sm:$0xf]
                %211 = vst [vmem:[%s179 + $0x3c] sm:$0xf] %v210
              $region41: #{linear_sigmoid.1} parent=35 // loop_footer
                %s177 = sadd.s32 1, %s173
              $region42: #{linear_sigmoid.1} parent=35 // loop_footer_branch
                %172 = sbr.rel target = $region38
              $region43: #{linear_sigmoid.1} parent=35 // loop_exit
                _
            $region36: #{linear_sigmoid.1} parent=27 // pred_fallthru
              _
          $region28: #{linear_sigmoid.1} parent=23 // pred_fallthru
            _
          %263 = vnop
        $region24: #{linear_sigmoid.1} parent=19 // pred_fallthru
          _
        // Predicated region
        $region62: #{linear_sigmoid.1} parent=19 // pred_check
          %p264 = pneg %p96
        $region63: #{linear_sigmoid.1} parent=19 // pred_check_branch
          %266 = sbr.rel (%p264) target = $region65
        $region64: #{linear_sigmoid.1} parent=19 // pred_region
          %p267 = scmp.lt.s32.totalorder %s20, 4
          %s268 = scalar_select %p267, %s20, 4
          %s269 = scalar_lea.vmem %s2, %s268
        $region65: #{linear_sigmoid.1} parent=19 // pred_fallthru
          _
      $region20: #{linear_sigmoid.1} parent=5 // pred_fallthru
        _
      %p270 = scmp.le.s32.totalorder 1, %s12
      %p271 = scmp.lt.s32.totalorder %s12, 6
      %p272 = pnand %p270, %p271
      %p273 = pneg %p272
      // Predicated region
      $region66: #{linear_sigmoid.1} parent=5 // pred_check
        _
      $region67: #{linear_sigmoid.1} parent=5 // pred_check_branch
        %275 = sbr.rel (%p272) target = $region69
      $region68: #{linear_sigmoid.1} parent=5 // pred_region
        %s276 = ssub.s32 %s12, 1
        %s277 = sand.u32 %s63, 1
        %s278 = sand.u32 %s63, 1
        %s279 = smul.addr %s278, 64
        %s280 = scalar_lea.vmem [#allocation2], %s279
        // Predicated region
        $region70: #{linear_sigmoid.1} parent=68 // pred_check
          %p281 = pneg %p76
        $region71: #{linear_sigmoid.1} parent=68 // pred_check_branch
          %283 = sbr.rel (%p281) target = $region73
        $region72: #{linear_sigmoid.1} parent=68 // pred_region
          _
        $region73: #{linear_sigmoid.1} parent=68 // pred_fallthru
          _
        %p284 = scmp.lt.s32.totalorder %s21, 0
        %s285 = scalar_select %p284, %s21, 0
        %s286 = smul.addr %s285, 4
        %s287 = scalar_lea.vmem %s0, %s286
        %p288 = pneg %p50
        %p289 = pneg %p47
        %s290 = sand.u32 %s63, 1
        %s291 = sand.u32 %s63, 1
        %s292 = smul.addr %s291, 64
        %s293 = scalar_lea.vmem [#allocation2], %s292
        %p294 = pneg %p76
        %p295 = pneg %p73
        %p296 = scmp.lt.s32.totalorder %s22, 4
        %s297 = scalar_select %p296, %s22, 4
        %s298 = scalar_lea.vmem %s2, %s297
        %p299 = pneg %p102
        %p300 = pneg %p99
        %p301 = pneg %p130
        %p302 = pneg %p127
        %s303 = sand.u32 %s117, 1
        %s304 = scalar_lea.sflag [#allocation4], %s303
        %s305 = sand.u32 %s117, 1
        %s306 = smul.addr %s305, 8
        %s307 = scalar_lea.vmem [#allocation3], %s306
        %p308 = scmp.lt.s32.totalorder %s21, 0
        %s309 = scalar_select %p308, %s21, 0
        %s310 = smul.addr %s309, 4
        %s311 = scalar_lea.vmem %s0, %s310
        %p312 = scmp.lt.s32.totalorder %s22, 4
        %s313 = scalar_select %p312, %s22, 4
        %s314 = scalar_lea.vmem %s2, %s313
        %v316 = vld [vmem:[%s311] sm:$0xf]
        %v317 = vld [vmem:[%s280] sm:$0xf]
        %v318 = vld [vmem:[%s280 + $0x4] sm:$0xf]
        %v319 = vld [vmem:[%s280 + $0x8] sm:$0xf]
        %v320 = vld [vmem:[%s280 + $0xc] sm:$0xf]
        %v321 = vld [vmem:[%s280 + $0x10] sm:$0xf]
        %v322 = vld [vmem:[%s280 + $0x14] sm:$0xf]
        %v323 = vld [vmem:[%s280 + $0x18] sm:$0xf]
        %v324 = vld [vmem:[%s280 + $0x1c] sm:$0xf]
        %v325 = vld [vmem:[%s280 + $0x20] sm:$0xf]
        %v326 = vld [vmem:[%s280 + $0x24] sm:$0xf]
        %v327 = vld [vmem:[%s280 + $0x28] sm:$0xf]
        %v328 = vld [vmem:[%s280 + $0x2c] sm:$0xf]
        %v329 = vld [vmem:[%s280 + $0x30] sm:$0xf]
        %v330 = vld [vmem:[%s280 + $0x34] sm:$0xf]
        %v331 = vld [vmem:[%s280 + $0x38] sm:$0xf]
        %v332 = vld [vmem:[%s280 + $0x3c] sm:$0xf]
        %v333 = vld [vmem:[%s314] sm:$0x1]
        %v335 = vlaneseq
        %v336 = vshrl.u32 %v335, 7
        %v337 = vsub.s32 0, %v336
        %v338 = vrot.slane %v333, %v337
        %v356 = vunpack.c.l.b16 %v317
        %v357 = vunpack.c.l.b16 %v318
        %v358 = vunpack.c.l.b16 %v319
        %v359 = vunpack.c.l.b16 %v320
        %v360 = vunpack.c.l.b16 %v321
        %v361 = vunpack.c.l.b16 %v322
        %v362 = vunpack.c.l.b16 %v323
        %v363 = vunpack.c.l.b16 %v324
        %v364 = vunpack.c.l.b16 %v325
        %v365 = vunpack.c.l.b16 %v326
        %v366 = vunpack.c.l.b16 %v327
        %v367 = vunpack.c.l.b16 %v328
        %v368 = vunpack.c.l.b16 %v329
        %v369 = vunpack.c.l.b16 %v330
        %v370 = vunpack.c.l.b16 %v331
        %v371 = vunpack.c.l.b16 %v332
        %v372 = vpack.c.b16 %v357, %v356
        %v373 = vpack.c.b16 %v359, %v358
        %v374 = vpack.c.b16 %v361, %v360
        %v375 = vpack.c.b16 %v363, %v362
        %v376 = vpack.c.b16 %v365, %v364
        %v377 = vpack.c.b16 %v367, %v366
        %v378 = vpack.c.b16 %v369, %v368
        %v379 = vpack.c.b16 %v371, %v370
        %388 = vmatprep.subr.bf16.mxu0 0
        %389 = vmatpush1.bf16.msra.mxu0 %v372
        %390 = vmatprep.subr.bf16.mxu0 0
        %391 = vmatpush1.bf16.msra.mxu0 %v373
        %392 = vmatprep.subr.bf16.mxu0 0
        %393 = vmatpush1.bf16.msra.mxu0 %v374
        %394 = vmatprep.subr.bf16.mxu0 0
        %395 = vmatpush1.bf16.msra.mxu0 %v375
        %396 = vmatprep.subr.bf16.mxu0 0
        %397 = vmatpush1.bf16.msra.mxu0 %v376
        %398 = vmatprep.subr.bf16.mxu0 0
        %399 = vmatpush1.bf16.msra.mxu0 %v377
        %400 = vmatprep.subr.bf16.mxu0 0
        %401 = vmatpush1.bf16.msra.mxu0 %v378
        %402 = vmatprep.subr.bf16.mxu0 0
        %403 = vmatpush1.bf16.msra.mxu0 %v379
        %404 = vmatprep.subr.bf16.mxu0 0
        %405 = vmatpush1.bf16.msra.mxu0 0
        %406 = vmatprep.subr.bf16.mxu0 0
        %407 = vmatpush1.bf16.msra.mxu0 0
        %408 = vmatprep.subr.bf16.mxu0 0
        %409 = vmatpush1.bf16.msra.mxu0 0
        %410 = vmatprep.subr.bf16.mxu0 0
        %411 = vmatpush1.bf16.msra.mxu0 0
        %412 = vmatprep.subr.bf16.mxu0 0
        %413 = vmatpush1.bf16.msra.mxu0 0
        %414 = vmatprep.subr.bf16.mxu0 0
        %415 = vmatpush1.bf16.msra.mxu0 0
        %416 = vmatprep.subr.bf16.mxu0 0
        %417 = vmatpush1.bf16.msra.mxu0 0
        %418 = vmatprep.subr.bf16.mxu0 0
        %419 = vmatpush1.bf16.msra.mxu0 0
        %420 = vmatprep.mubr.bf16.mxu0 0
        %421 = vmatmul.mubr.bf16.gmra.mrb[0].mxu0 %v316
        %v422 = vpop.f32.mrb[0].mxu0
        %v423 = vadd.f32 %v338, %v422
        %v424 = vpop.f32.mrb[0].mxu0
        %v425 = vpop.f32.mrb[0].mxu0
        %v426 = vpop.f32.mrb[0].mxu0
        %427 = vdwg.mxu0
        %v428 = vxor.u32 %v423, 2147483648
        %v429 = vmul.f32 %v428, 1.442695
        %v430 = vpow.pop %v429
        %v431 = vadd.f32 %v430, 1.0
        %v432 = vrcp.pop %v431
        %v433 = vmul.f32 1.0, %v432
        %434 = vst [vmem:[%s307] sm:$0xff] %v433
        %s435 = sand.u32 %s117, 1
        %s436 = scalar_lea.sflag [#allocation4], %s435
        %s437 = sand.u32 %s117, 1
        %s438 = smul.addr %s437, 8
        %s439 = scalar_lea.vmem [#allocation3], %s438
        // Predicated region
        $region74: #{linear_sigmoid.1} parent=68 // pred_check
          %p440 = pneg %p127
        $region75: #{linear_sigmoid.1} parent=68 // pred_check_branch
          %442 = sbr.rel (%p440) target = $region77
        $region76: #{linear_sigmoid.1} parent=68 // pred_region
          %s444 = ssub.s32 128, 128
          %445 = vsyncadd %s436, %s444
          %s446 = smul.addr %s21, 5
          %s447 = sadd.s32 %s22, %s446
          %s448 = smul.addr %s447, 128
          %s449 = scalar_lea.hbm %s3, %s448
          %s451 = sshll.u32 %s439, 4
          %s452 = int_to_ptr.vmem [resolvable:$true] %s451
          %454 = dma.vmem_to_hbm [thread:$0]  %s452, 128, %s449, %s436
        $region77: #{linear_sigmoid.1} parent=68 // pred_fallthru
          _
      $region69: #{linear_sigmoid.1} parent=5 // pred_fallthru
        _
      %p455 = scmp.le.s32.totalorder 2, %s12
      // Predicated region
      $region78: #{linear_sigmoid.1} parent=5 // pred_check
        %p456 = pneg %p455
      $region79: #{linear_sigmoid.1} parent=5 // pred_check_branch
        %458 = sbr.rel (%p456) target = $region81
      $region80: #{linear_sigmoid.1} parent=5 // pred_region
        %s459 = ssub.s32 %s12, 2
        // Predicated region
        $region82: #{linear_sigmoid.1} parent=80 // pred_check
          %p460 = pneg %p133
        $region83: #{linear_sigmoid.1} parent=80 // pred_check_branch
          %462 = sbr.rel (%p460) target = $region85
        $region84: #{linear_sigmoid.1} parent=80 // pred_region
          %s463 = sand.u32 %s118, 1
          %s464 = scalar_lea.sflag [#allocation4], %s463
          %s465 = sand.u32 %s118, 1
          %s466 = smul.addr %s465, 8
          %s467 = scalar_lea.vmem [#allocation3], %s466
          %468 = dma.done %s464, 128
        $region85: #{linear_sigmoid.1} parent=80 // pred_fallthru
          _
      $region81: #{linear_sigmoid.1} parent=5 // pred_fallthru
        _
    $region6: #{linear_sigmoid.1} parent=1 // loop_footer
      %s16 = sadd.s32 1, %s12
    $region7: #{linear_sigmoid.1} parent=1 // loop_footer_branch
      %11 = sbr.rel target = $region3
    $region8: #{linear_sigmoid.1} parent=1 // loop_exit
      _
    %469 = vsyncpa [#allocation4], 1
    %s470 = scalar_lea.sflag [#allocation4], 1
    %471 = vsyncpa %s470, 1

</llo_original>
